<compile_context>
chip_gen: v7x
topology: tpu7x:2x2x1
jax: 0.10.0
libtpu: 0.0.40
codegen_flags: <defaults>
</compile_context>

<pallas_src>
import functools
import math

import jax
import jax.numpy as jnp
from jax import lax
from jax.experimental import pallas as pl
from jax.experimental.pallas import tpu as pltpu

_VMEM_LIMIT = 32 * 1024 * 1024


# ----------------------------------------------------------------------------
# Kernel 1: conv1 (80x1 conv == matmul over the frequency axis) + bias + ReLU.
# BatchNorm is already folded into (w, b) at param-prep time.
# ----------------------------------------------------------------------------
def _conv1_relu_kernel(x_ref, w_ref, b_ref, o_ref):
    # x_ref: (1, T, 80) bf16; w_ref: (80, C) bf16; b_ref: (1, C) f32.
    y = jnp.dot(x_ref[0], w_ref[...], preferred_element_type=jnp.float32)
    o_ref[0] = jnp.maximum(y + b_ref[...], 0.0).astype(o_ref.dtype)


def conv1_relu(x, w, b):
    # x: (B, T, 80) bf16 ; w: (80, C) bf16 ; b: (C,) f32  ->  (B, T, C) bf16
    B, T, F = x.shape
    C = w.shape[1]
    return pl.pallas_call(
        _conv1_relu_kernel,
        out_shape=jax.ShapeDtypeStruct((B, T, C), jnp.bfloat16),
        grid=(B,),
        in_specs=[
            pl.BlockSpec((1, T, F), lambda bb: (bb, 0, 0)),
            pl.BlockSpec((F, C), lambda bb: (0, 0)),          # resident weight
            pl.BlockSpec((1, C), lambda bb: (0, 0)),
        ],
        out_specs=pl.BlockSpec((1, T, C), lambda bb: (bb, 0, 0)),
        compiler_params=pltpu.CompilerParams(
            dimension_semantics=("parallel",),
            vmem_limit_bytes=_VMEM_LIMIT),
        cost_estimate=pl.CostEstimate(
            flops=2 * B * T * F * C, transcendentals=0,
            bytes_accessed=B * T * F * 2 + F * C * 2 + C * 4 + B * T * C * 2),
    )(x, w, b.reshape(1, C).astype(jnp.float32))


# ----------------------------------------------------------------------------
# Kernel 2: fused [1-D conv along T (K taps) + bias + ReLU + MaxPool(3, s=2, p=1)].
# One grid step per batch element; the whole (K, Cin, Cout) weight is VMEM
# resident; conv zero-padding lives in a VMEM scratch; the pool is computed on
# the f32 pre-pool activation staged in VMEM via stride-2 reads.
# ----------------------------------------------------------------------------
def _conv_pool_relu_kernel(x_ref, w_ref, b_ref, o_ref, xpad_ref, y_ref, *, K, T):
    pad = K // 2
    To = T // 2

    # Zero-padded input window in VMEM (no HBM jnp.pad round-trip).
    xpad_ref[...] = jnp.zeros_like(xpad_ref)
    xpad_ref[pl.ds(pad, T), :] = x_ref[0]

    # Static, unrolled tap loop: K small matmuls, bf16 MXU inputs, f32 accum.
    acc = jnp.zeros_like(y_ref)
    for k in range(K):                       # static offsets -> aligned codegen
        acc = acc + jnp.dot(xpad_ref[pl.ds(k, T), :], w_ref[k],
                            preferred_element_type=jnp.float32)

    # Bias + ReLU in f32; staged in VMEM for the strided pool reads.
    y_ref[...] = jnp.maximum(acc + b_ref[...], 0.0)

    # Fused MaxPool: output i covers inputs {2i-1, 2i, 2i+1}; the i=0 left
    # neighbour is padding, and zero padding is equivalent to -inf because the
    # inputs are post-ReLU (>= 0).
    even = y_ref[pl.ds(0, To, stride=2), :]            # y[2i]
    odd = y_ref[pl.ds(1, To, stride=2), :]             # y[2i+1]
    left = pltpu.roll(odd, 1, 0)                       # y[2i-1] (row 0 wraps)
    row0 = lax.broadcasted_iota(jnp.int32, left.shape, 0) == 0
    left = jnp.where(row0, 0.0, left)
    o_ref[0] = jnp.maximum(jnp.maximum(left, even), odd).astype(o_ref.dtype)


def conv_pool_relu(x, w, b, out_dtype=jnp.bfloat16):
    # x: (B, T, Cin) bf16 ; w: (K, Cin, Cout) bf16 (cross-correlation, like
    # torch) ; b: (Cout,) f32   ->   (B, T//2, Cout) out_dtype
    B, T, Cin = x.shape
    K, _, Cout = w.shape
    assert T % 2 == 0, "MaxPool fusion assumes an even time length"
    pad = K // 2
    To = T // 2
    kern = functools.partial(_conv_pool_relu_kernel, K=K, T=T)
    flops = 2 * B * T * K * Cin * Cout
    bytes_accessed = (B * T * Cin * x.dtype.itemsize
                      + K * Cin * Cout * w.dtype.itemsize
                      + Cout * 4
                      + B * To * Cout * jnp.dtype(out_dtype).itemsize)
    return pl.pallas_call(
        kern,
        out_shape=jax.ShapeDtypeStruct((B, To, Cout), out_dtype),
        grid=(B,),
        in_specs=[
            pl.BlockSpec((1, T, Cin), lambda bb: (bb, 0, 0)),
            pl.BlockSpec((K, Cin, Cout), lambda bb: (0, 0, 0)),  # resident w
            pl.BlockSpec((1, Cout), lambda bb: (0, 0)),
        ],
        out_specs=pl.BlockSpec((1, To, Cout), lambda bb: (bb, 0, 0)),
        scratch_shapes=[
            pltpu.VMEM((T + 2 * pad, Cin), x.dtype),     # zero-padded input
            pltpu.VMEM((T, Cout), jnp.float32),          # pre-pool activation
        ],
        compiler_params=pltpu.CompilerParams(
            dimension_semantics=("parallel",),
            vmem_limit_bytes=_VMEM_LIMIT),
        cost_estimate=pl.CostEstimate(flops=flops, transcendentals=0,
                                      bytes_accessed=bytes_accessed),
    )(x, w, b.reshape(1, Cout).astype(jnp.float32))


# ----------------------------------------------------------------------------
# Full forward (matches Davenet.forward; default l=5)
# ----------------------------------------------------------------------------
def davenet_forward(params, x, l=5):
    if x.ndim == 3:
        x = x[:, None, :, :]
    B, _, F, T = x.shape
    assert F == 80, "conv1 kernel height is 80, so the frequency axis must be 80"
    xt = jnp.transpose(x[:, 0, :, :], (0, 2, 1)).astype(jnp.bfloat16)  # (B,T,80)

    h = conv1_relu(xt, params["w1"], params["b1"])                    # (B,T,128)
    h = conv_pool_relu(h, params["w2"], params["b2"])                 # (B,T/2,256)
    h = conv_pool_relu(h, params["w3"], params["b3"])                 # (B,T/4,512)
    if l == 3:
        return jnp.transpose(h.astype(jnp.float32), (0, 2, 1))[:, :, None, :]
    h = conv_pool_relu(h, params["w4"], params["b4"])                 # (B,T/8,512)
    if l == 4:
        return jnp.transpose(h.astype(jnp.float32), (0, 2, 1))[:, :, None, :]
    h = conv_pool_relu(h, params["w5"], params["b5"],
                       out_dtype=jnp.float32)                         # (B,T/16,E)
    return h   # already the squeeze(2).permute(0,2,1) layout


# ----------------------------------------------------------------------------
# Parameters: raw (f32, torch-equivalent) + prep (BN fold + bf16 weight cast)
# ----------------------------------------------------------------------------
def init_params(key, embedding_dim=256):
    ks = jax.random.split(key, 10)

    def w(k, shape, fan_in):
        return jax.random.normal(k, shape, jnp.float32) / math.sqrt(fan_in)

    p = {
        "w1": w(ks[0], (80, 128), 80),                 # conv1: (128,1,80,1)
        "b1": 0.01 * jax.random.normal(ks[1], (128,), jnp.float32),
        "w2": w(ks[2], (11, 128, 256), 11 * 128),      # conv2: (K,Cin,Cout)
        "b2": 0.01 * jax.random.normal(ks[3], (256,), jnp.float32),
        "w3": w(ks[4], (17, 256, 512), 17 * 256),
        "b3": 0.01 * jax.random.normal(ks[5], (512,), jnp.float32),
        "w4": w(ks[6], (17, 512, 512), 17 * 512),
        "b4": 0.01 * jax.random.normal(ks[7], (512,), jnp.float32),
        "w5": w(ks[8], (17, 512, embedding_dim), 17 * 512),
        "b5": 0.01 * jax.random.normal(ks[9], (embedding_dim,), jnp.float32),
    }
    # BatchNorm2d(1), inference mode with deterministic running stats.
    gamma, beta, rmean, rvar, eps = 1.2, 0.1, 0.05, 0.9, 1e-5
    scale = gamma / math.sqrt(rvar + eps)
    p["bn_scale"] = float(scale)
    p["bn_shift"] = float(beta - rmean * scale)
    return p


def prepare_params(raw):
    """Fold BN into conv1 (exact for inference-mode BN) and cast MXU weights to bf16."""
    scale, shift = raw["bn_scale"], raw["bn_shift"]
    w1 = raw["w1"]
    p = {
        "w1": (scale * w1).astype(jnp.bfloat16),
        "b1": (raw["b1"] + shift * jnp.sum(w1, axis=0)).astype(jnp.float32),
    }
    for i in (2, 3, 4, 5):
        p[f"w{i}"] = raw[f"w{i}"].astype(jnp.bfloat16)
        p[f"b{i}"] = raw[f"b{i}"].astype(jnp.float32)
    return p


# ----------------------------------------------------------------------------
# Pure-JAX reference (lax.conv / reduce_window, independent of the Pallas path;
# same bf16-input / f32-accumulate precision so the comparison is tight).
# ----------------------------------------------------------------------------
def davenet_reference(params, x):
    if x.ndim == 3:
        x = x[:, None, :, :]
    h = jnp.transpose(x[:, 0, :, :], (0, 2, 1)).astype(jnp.bfloat16)   # (B,T,80)
    h = jax.nn.relu(
        jnp.einsum("btf,fc->btc", h, params["w1"],
                   preferred_element_type=jnp.float32) + params["b1"])

    def conv(h, w, b):
        pad = w.shape[0] // 2
        y = lax.conv_general_dilated(
            h.astype(jnp.bfloat16), w, window_strides=(1,),
            padding=[(pad, pad)],
            dimension_numbers=("NWC", "WIO", "NWC"),
            preferred_element_type=jnp.float32)
        return jax.nn.relu(y + b)

    def pool(h):
        return lax.reduce_window(h, -jnp.inf, lax.max,
                                 (1, 3, 1), (1, 2, 1),
                                 [(0, 0), (1, 1), (0, 0)])

    h = pool(conv(h, params["w2"], params["b2"]))
    h = pool(conv(h, params["w3"], params["b3"]))
    h = pool(conv(h, params["w4"], params["b4"]))
    h = pool(conv(h, params["w5"], params["b5"]))
    return h


if __name__ == "__main__":
    key = jax.random.PRNGKey(0)
    kx, kp = jax.random.split(key)

    B, F, T = 2, 80, 64          # F must be 80 (conv1 kernel height); T % 16 == 0
    E = 256                      # small embedding_dim for the demo
    x = jax.random.normal(kx, (B, 1, F, T), jnp.float32)
    params = prepare_params(init_params(kp, embedding_dim=E))

    out = jax.block_until_ready(davenet_forward(params, x, l=5))
    assert out.shape == (B, T // 16, E), out.shape

    ref = jax.block_until_ready(davenet_reference(params, x))
    rel_err = float(jnp.max(jnp.abs(out - ref)) /
                    jnp.maximum(1.0, jnp.max(jnp.abs(ref))))
    assert rel_err < 1e-2, f"mismatch vs reference: rel_err={rel_err}"

    print("KERNEL_OK")
</pallas_src>

<mosaic_0001>
module attributes {stable_mosaic.version = 11 : i64} {
  func.func @_conv1_relu_kernel(%arg0: i32, %arg1: memref<1x64x80xbf16, #tpu.memory_space<vmem>>, %arg2: memref<80x128xbf16, #tpu.memory_space<vmem>>, %arg3: memref<1x128xf32, #tpu.memory_space<vmem>>, %arg4: memref<1x64x128xbf16, #tpu.memory_space<vmem>>) attributes {dimension_semantics = [#tpu.dimension_semantics<parallel>], iteration_bounds = array<i64: 2>, scalar_prefetch = 0 : i64, scratch_operands = 0 : i64, tpu.core_type = #tpu.core_type<tc>, window_params = [{transform_indices = @transform_0, window_bounds = array<i64: 1, 64, 80>}, {pipeline_mode = #tpu.pipeline_mode<synchronous>, transform_indices = @transform_1, window_bounds = array<i64: 80, 128>}, {pipeline_mode = #tpu.pipeline_mode<synchronous>, transform_indices = @transform_2, window_bounds = array<i64: 1, 128>}, {transform_indices = @transform_3, window_bounds = array<i64: 1, 64, 128>}]} {
    %c0 = arith.constant 0 : index
    %c0_0 = arith.constant 0 : index
    %c0_1 = arith.constant 0 : index
    %0 = vector.load %arg1[%c0, %c0_0, %c0_1] : memref<1x64x80xbf16, #tpu.memory_space<vmem>>, vector<1x64x80xbf16>
    %1 = vector.shape_cast %0 : vector<1x64x80xbf16> to vector<64x80xbf16>
    %c0_2 = arith.constant 0 : index
    %c0_3 = arith.constant 0 : index
    %2 = vector.load %arg2[%c0_2, %c0_3] : memref<80x128xbf16, #tpu.memory_space<vmem>>, vector<80x128xbf16>
    %cst = arith.constant dense<0.000000e+00> : vector<64x128xf32>
    %3 = tpu.matmul %1, %2, %cst {dimension_numbers = #tpu.dot_dimension_numbers<[1], [0], [0], [1], [0, 0, 1, 1], [], []>} : vector<64x80xbf16>, vector<80x128xbf16>, vector<64x128xf32> -> vector<64x128xf32>
    %c0_4 = arith.constant 0 : index
    %c0_5 = arith.constant 0 : index
    %4 = vector.load %arg3[%c0_4, %c0_5] : memref<1x128xf32, #tpu.memory_space<vmem>>, vector<1x128xf32>
    %5 = vector.broadcast %4 : vector<1x128xf32> to vector<64x128xf32>
    %6 = arith.addf %3, %5 : vector<64x128xf32>
    %cst_6 = arith.constant 0.000000e+00 : f32
    %7 = vector.broadcast %cst_6 : f32 to vector<64x128xf32>
    %8 = arith.maximumf %6, %7 : vector<64x128xf32>
    %9 = arith.truncf %8 : vector<64x128xf32> to vector<64x128xbf16>
    %c0_7 = arith.constant 0 : index
    %c0_8 = arith.constant 0 : index
    %c0_9 = arith.constant 0 : index
    %10 = vector.load %arg4[%c0_7, %c0_8, %c0_9] : memref<1x64x128xbf16, #tpu.memory_space<vmem>>, vector<1x64x128xbf16>
    %11 = vector.shape_cast %10 : vector<1x64x128xbf16> to vector<64x128xbf16>
    %12 = vector.shape_cast %9 : vector<64x128xbf16> to vector<1x64x128xbf16>
    tpu.vector_store %arg4[%c0_7, %c0_8, %c0_9], %12 {strides = array<i32>} : memref<1x64x128xbf16, #tpu.memory_space<vmem>>, vector<1x64x128xbf16>,
    return
  }
  func.func @transform_0(%arg0: i32) -> (i32, i32, i32) {
    %c0_i32 = arith.constant 0 : i32
    %c0_i32_0 = arith.constant 0 : i32
    %c0_i32_1 = arith.constant 0 : i32
    return %arg0, %c0_i32, %c0_i32_0 : i32, i32, i32
  }
  func.func @transform_1(%arg0: i32) -> (i32, i32) {
    %c0_i32 = arith.constant 0 : i32
    %c0_i32_0 = arith.constant 0 : i32
    %c0_i32_1 = arith.constant 0 : i32
    return %c0_i32, %c0_i32_0 : i32, i32
  }
  func.func @transform_2(%arg0: i32) -> (i32, i32) {
    %c0_i32 = arith.constant 0 : i32
    %c0_i32_0 = arith.constant 0 : i32
    %c0_i32_1 = arith.constant 0 : i32
    return %c0_i32, %c0_i32_0 : i32, i32
  }
  func.func @transform_3(%arg0: i32) -> (i32, i32, i32) {
    %c0_i32 = arith.constant 0 : i32
    %c0_i32_0 = arith.constant 0 : i32
    %c0_i32_1 = arith.constant 0 : i32
    return %arg0, %c0_i32, %c0_i32_0 : i32, i32, i32
  }
}

</mosaic_0001>

<llo_original>
// kernel: tpu_custom_call.1
$region0: #{tpu_custom_call.1}
  #allocation0 [shape = 'u32[]', space=smem, size = 0x4, offset = 0x4, fixed_abs, tag = 'smem constant byte address 0x4 - core index']
  #allocation1 [shape = 'u32[144,128]{1,0:T(1,128)}', space=vmem, size = 0x12000, scoped, tag = 'internal scratch']
  %s0 = inlined_call_operand.hbm [shape: bf16[2,64,80], index: 0, kind: input, shape index: {}]
  %s1 = inlined_call_operand.hbm [shape: bf16[80,128], index: 1, kind: input, shape index: {}]
  %s2 = inlined_call_operand.vmem [shape: f32[1,128], index: 2, kind: input, shape index: {}]
  %s3 = inlined_call_operand.hbm [shape: bf16[2,64,128], index: 3, kind: output, shape index: {}]
  %s4 = sld [smem:[#allocation0]]
  $region53: #{tpu_custom_call.1} parent=0
    _
  %s6 = ssub.s32 1, %s4
  %s7 = scalar_select 0, %s6, %s4
  $region1: #{tpu_custom_call.1} parent=0
    #allocation2 [shape = 'u8[32768]{0}', space=vmem, size = 0x8000, scoped, tag = 'input window, operand 0']
    #allocation3 [shape = 's32[2]{0}', space=sflag, size = 0x8, scoped, tag = 'scoped memory for tpu_custom_call.1']
    #allocation4 [shape = 's32[2]{0}', space=sflag, size = 0x8, scoped, tag = 'scoped memory for tpu_custom_call.1']
    #allocation5 [shape = 'u8[20480]{0}', space=vmem, size = 0x5000, scoped, tag = 'input window, operand 1, single buffered']
    #allocation6 [shape = 's32[1]{0}', space=sflag, size = 0x4, scoped, tag = 'scoped memory for tpu_custom_call.1']
    #allocation7 [shape = 'u8[32768]{0}', space=vmem, size = 0x8000, scoped, tag = 'output window, operand 0']
    %8 = vsyncpa [#allocation3], 0
    %s9 = scalar_lea.sflag [#allocation3], 1
    %10 = vsyncpa %s9, 0
    %11 = vsyncpa [#allocation6], 0
    %12 = vsyncpa [#allocation4], 0
    %s13 = scalar_lea.sflag [#allocation4], 1
    %14 = vsyncpa %s13, 0
    loop: start=0, step=1, limit=4
    $region2: #{tpu_custom_call.1} parent=1 // loop_pre_header
      _
    $region3: #{tpu_custom_call.1} parent=1 // loop_header
      %s16 = sphi 0, %s20
      %p17 = scmp.ge.s32.totalorder %s16, 4
      %s26 = sphi 0, %s28
      %s29 = sphi 0, %s26
      %s30 = sphi 0, %s29
      %s46 = sphi 0, %s30
      %s50 = sphi 0, %s50
      %s52 = sphi 0, %s50
      %s53 = sphi 0, %s52
      %s67 = sphi 0, %s53
      %s71 = sphi 0, %s71
      %s73 = sphi 0, %s71
      %s74 = sphi 0, %s73
      %s88 = sphi 0, %s74
      %s94 = sphi 0, %s96
      %s97 = sphi 0, %s94
      %s98 = sphi 0, %s97
      %s114 = sphi 0, %s98
    $region4: #{tpu_custom_call.1} parent=1 // loop_header_branch
      %19 = sbr.rel (%p17) target = $region8
    $region5: #{tpu_custom_call.1} parent=1 // loop_body
      %s21 = ssub.s32 %s16, 1
      %s22 = ssub.s32 %s16, 2
      %s23 = sadd.s32 %s16, 1
      %s24 = ssub.s32 %s16, %s23
      %p25 = scmp.eq.s32.totalorder %s24, 0
      %s27 = sadd.s32 %s26, 1
      %s28 = scalar_select %p25, %s26, %s27
      %p31 = pneg %p25
      %p32 = scmp.eq.s32.totalorder %s16, 1
      %p33 = por %p31, %p32
      %p34 = scmp.ne.s32.totalorder %s26, %s29
      %p35 = scmp.eq.s32.totalorder %s16, 0
      %p36 = por %p34, %p35
      %p37 = scmp.ne.s32.totalorder %s26, %s29
      %p38 = scmp.eq.s32.totalorder %s21, 1
      %p39 = por %p37, %p38
      %p40 = scmp.ne.s32.totalorder %s29, %s30
      %p41 = scmp.eq.s32.totalorder %s21, 0
      %p42 = por %p40, %p41
      %p43 = scmp.ne.s32.totalorder %s29, %s30
      %p44 = scmp.eq.s32.totalorder %s22, 1
      %p45 = por %p43, %p44
      %p47 = scmp.ne.s32.totalorder %s30, %s46
      %p48 = scmp.eq.s32.totalorder %s22, 0
      %p49 = por %p47, %p48
      %s51 = sadd.s32 %s50, 1
      %p54 = scmp.eq.s32.totalorder %s16, 1
      %p55 = scmp.ne.s32.totalorder %s50, %s52
      %p56 = scmp.eq.s32.totalorder %s16, 0
      %p57 = por %p55, %p56
      %p58 = scmp.ne.s32.totalorder %s50, %s52
      %p59 = scmp.eq.s32.totalorder %s21, 1
      %p60 = por %p58, %p59
      %p61 = scmp.ne.s32.totalorder %s52, %s53
      %p62 = scmp.eq.s32.totalorder %s21, 0
      %p63 = por %p61, %p62
      %p64 = scmp.ne.s32.totalorder %s52, %s53
      %p65 = scmp.eq.s32.totalorder %s22, 1
      %p66 = por %p64, %p65
      %p68 = scmp.ne.s32.totalorder %s53, %s67
      %p69 = scmp.eq.s32.totalorder %s22, 0
      %p70 = por %p68, %p69
      %s72 = sadd.s32 %s71, 1
      %p75 = scmp.eq.s32.totalorder %s16, 1
      %p76 = scmp.ne.s32.totalorder %s71, %s73
      %p77 = scmp.eq.s32.totalorder %s16, 0
      %p78 = por %p76, %p77
      %p79 = scmp.ne.s32.totalorder %s71, %s73
      %p80 = scmp.eq.s32.totalorder %s21, 1
      %p81 = por %p79, %p80
      %p82 = scmp.ne.s32.totalorder %s73, %s74
      %p83 = scmp.eq.s32.totalorder %s21, 0
      %p84 = por %p82, %p83
      %p85 = scmp.ne.s32.totalorder %s73, %s74
      %p86 = scmp.eq.s32.totalorder %s22, 1
      %p87 = por %p85, %p86
      %p89 = scmp.ne.s32.totalorder %s74, %s88
      %p90 = scmp.eq.s32.totalorder %s22, 0
      %p91 = por %p89, %p90
      %s92 = ssub.s32 %s16, %s23
      %p93 = scmp.eq.s32.totalorder %s92, 0
      %s95 = sadd.s32 %s94, 1
      %s96 = scalar_select %p93, %s94, %s95
      %p99 = pneg %p93
      %p100 = scmp.eq.s32.totalorder %s16, 1
      %p101 = por %p99, %p100
      %p102 = scmp.ne.s32.totalorder %s94, %s97
      %p103 = scmp.eq.s32.totalorder %s16, 0
      %p104 = por %p102, %p103
      %p105 = scmp.ne.s32.totalorder %s94, %s97
      %p106 = scmp.eq.s32.totalorder %s21, 1
      %p107 = por %p105, %p106
      %p108 = scmp.ne.s32.totalorder %s97, %s98
      %p109 = scmp.eq.s32.totalorder %s21, 0
      %p110 = por %p108, %p109
      %p111 = scmp.ne.s32.totalorder %s97, %s98
      %p112 = scmp.eq.s32.totalorder %s22, 1
      %p113 = por %p111, %p112
      %p115 = scmp.ne.s32.totalorder %s98, %s114
      %p116 = scmp.eq.s32.totalorder %s22, 0
      %p117 = por %p115, %p116
      %p118 = scmp.le.s32.totalorder 1, %s16
      %p119 = scmp.lt.s32.totalorder %s16, 3
      %p120 = pnand %p118, %p119
      %p121 = pneg %p120
      // Predicated region
      $region9: #{tpu_custom_call.1} parent=5 // pred_check
        _
      $region10: #{tpu_custom_call.1} parent=5 // pred_check_branch
        %123 = sbr.rel (%p120) target = $region12
      $region11: #{tpu_custom_call.1} parent=5 // pred_region
        %s124 = ssub.s32 %s16, 1
        // Predicated region
        $region13: #{tpu_custom_call.1} parent=11 // pred_check
          %p125 = pneg %p63
        $region14: #{tpu_custom_call.1} parent=11 // pred_check_branch
          %127 = sbr.rel (%p125) target = $region16
        $region15: #{tpu_custom_call.1} parent=11 // pred_region
          %s129 = ssub.s32 640, 640
          %130 = vsyncadd [#allocation6], %s129
          %s131 = sshll.u32 [#allocation5], 4
          %s132 = int_to_ptr.vmem [resolvable:$true] %s131
          %137 = dma.hbm_to_vmem [thread:$0]  %s1, 640, %s132, [#allocation6], 64, 64, 4
        $region16: #{tpu_custom_call.1} parent=11 // pred_fallthru
          _
        // Predicated region
        $region17: #{tpu_custom_call.1} parent=11 // pred_check
          %p138 = pneg %p84
        $region18: #{tpu_custom_call.1} parent=11 // pred_check_branch
          %140 = sbr.rel (%p138) target = $region20
        $region19: #{tpu_custom_call.1} parent=11 // pred_region
          _
        $region20: #{tpu_custom_call.1} parent=11 // pred_fallthru
          _
      $region12: #{tpu_custom_call.1} parent=5 // pred_fallthru
        _
      %p141 = scmp.lt.s32.totalorder %s16, 2
      // Predicated region
      $region21: #{tpu_custom_call.1} parent=5 // pred_check
        %p142 = pneg %p141
      $region22: #{tpu_custom_call.1} parent=5 // pred_check_branch
        %144 = sbr.rel (%p142) target = $region24
      $region23: #{tpu_custom_call.1} parent=5 // pred_region
        // Predicated region
        $region25: #{tpu_custom_call.1} parent=23 // pred_check
          %p145 = pneg %p36
        $region26: #{tpu_custom_call.1} parent=23 // pred_check_branch
          %147 = sbr.rel (%p145) target = $region28
        $region27: #{tpu_custom_call.1} parent=23 // pred_region
          %s148 = sand.u32 %s26, 1
          %s149 = scalar_lea.sflag [#allocation3], %s148
          %s150 = sand.u32 %s26, 1
          %s151 = smul.addr %s150, 32
          %s152 = scalar_lea.vmem [#allocation2], %s151
          %s154 = ssub.s32 512, 512
          %155 = vsyncadd %s149, %s154
          %s156 = smul.addr %s16, 8
          %s157 = smul.addr %s156, 64
          %s158 = scalar_lea.hbm %s0, %s157
          %s159 = sshll.u32 %s152, 4
          %s160 = int_to_ptr.vmem [resolvable:$true] %s159
          %165 = dma.hbm_to_vmem [thread:$0]  %s158, 512, %s160, %s149, 64, 64, 4
        $region28: #{tpu_custom_call.1} parent=23 // pred_fallthru
          _
      $region24: #{tpu_custom_call.1} parent=5 // pred_fallthru
        _
      %p166 = scmp.le.s32.totalorder 1, %s16
      %p167 = scmp.lt.s32.totalorder %s16, 3
      %p168 = pnand %p166, %p167
      %p169 = pneg %p168
      // Predicated region
      $region29: #{tpu_custom_call.1} parent=5 // pred_check
        _
      $region30: #{tpu_custom_call.1} parent=5 // pred_check_branch
        %171 = sbr.rel (%p168) target = $region32
      $region31: #{tpu_custom_call.1} parent=5 // pred_region
        %s172 = ssub.s32 %s16, 1
        %s173 = sand.u32 %s29, 1
        %s174 = scalar_lea.sflag [#allocation3], %s173
        %s175 = sand.u32 %s29, 1
        %s176 = smul.addr %s175, 32
        %s177 = scalar_lea.vmem [#allocation2], %s176
        // Predicated region
        $region33: #{tpu_custom_call.1} parent=31 // pred_check
          %p178 = pneg %p42
        $region34: #{tpu_custom_call.1} parent=31 // pred_check_branch
          %180 = sbr.rel (%p178) target = $region36
        $region35: #{tpu_custom_call.1} parent=31 // pred_region
          %181 = dma.done %s174, 512
        $region36: #{tpu_custom_call.1} parent=31 // pred_fallthru
          _
        // Predicated region
        $region37: #{tpu_custom_call.1} parent=31 // pred_check
          %p182 = pneg %p63
        $region38: #{tpu_custom_call.1} parent=31 // pred_check_branch
          %184 = sbr.rel (%p182) target = $region40
        $region39: #{tpu_custom_call.1} parent=31 // pred_region
          %185 = dma.done [#allocation6], 640
        $region40: #{tpu_custom_call.1} parent=31 // pred_fallthru
          _
        %s186 = sand.u32 %s29, 1
        %s187 = scalar_lea.sflag [#allocation3], %s186
        %s188 = sand.u32 %s29, 1
        %s189 = smul.addr %s188, 32
        %s190 = scalar_lea.vmem [#allocation2], %s189
        %p191 = pneg %p42
        %p192 = pneg %p39
        %p193 = pneg %p63
        %p194 = pneg %p60
        %p195 = pneg %p84
        %p196 = pneg %p81
        %p197 = pneg %p110
        %p198 = pneg %p107
        %s199 = sand.u32 %s97, 1
        %s200 = scalar_lea.sflag [#allocation4], %s199
        %s201 = sand.u32 %s97, 1
        %s202 = smul.addr %s201, 32
        %s203 = scalar_lea.vmem [#allocation7], %s202
        %v205 = vld [vmem:[%s177] sm:$0xf]
        %v206 = vld [vmem:[%s177 + $0x4] sm:$0xf]
        %v207 = vld [vmem:[%s177 + $0x8] sm:$0xf]
        %v208 = vld [vmem:[%s177 + $0xc] sm:$0xf]
        %v209 = vld [vmem:[%s177 + $0x10] sm:$0xf]
        %v210 = vld [vmem:[%s177 + $0x14] sm:$0xf]
        %v211 = vld [vmem:[%s177 + $0x18] sm:$0xf]
        %v212 = vld [vmem:[%s177 + $0x1c] sm:$0xf]
        %v213 = vld [vmem:[#allocation5] sm:$0xf]
        %v214 = vld [vmem:[#allocation5 + $0x4] sm:$0xf]
        %v215 = vld [vmem:[#allocation5 + $0x8] sm:$0xf]
        %v216 = vld [vmem:[#allocation5 + $0xc] sm:$0xf]
        %v217 = vld [vmem:[#allocation5 + $0x10] sm:$0xf]
        %v218 = vld [vmem:[#allocation5 + $0x14] sm:$0xf]
        %v219 = vld [vmem:[#allocation5 + $0x18] sm:$0xf]
        %v220 = vld [vmem:[#allocation5 + $0x1c] sm:$0xf]
        %v221 = vld [vmem:[#allocation5 + $0x20] sm:$0xf]
        %v222 = vld [vmem:[#allocation5 + $0x24] sm:$0xf]
        %v223 = vld [vmem:[%s2] sm:$0x1]
        %v225 = vlaneseq
        %v226 = vshrl.u32 %v225, 7
        %v227 = vsub.s32 0, %v226
        %v228 = vrot.slane %v223, %v227
        %v238 = vunpack.c.l.b16 %v205
        %v239 = vunpack.c.l.b16 %v206
        %v240 = vunpack.c.l.b16 %v207
        %v241 = vunpack.c.l.b16 %v208
        %v242 = vunpack.c.l.b16 %v209
        %v243 = vunpack.c.l.b16 %v210
        %v244 = vunpack.c.l.b16 %v211
        %v245 = vunpack.c.l.b16 %v212
        %v246 = vpack.c.b16 %v239, %v238
        %v247 = vpack.c.b16 %v241, %v240
        %v248 = vpack.c.b16 %v243, %v242
        %v249 = vpack.c.b16 %v245, %v244
        %v260 = vunpack.c.l.b16 %v213
        %v261 = vunpack.c.l.b16 %v214
        %v262 = vunpack.c.l.b16 %v215
        %v263 = vunpack.c.l.b16 %v216
        %v264 = vunpack.c.l.b16 %v217
        %v265 = vunpack.c.l.b16 %v218
        %v266 = vunpack.c.l.b16 %v219
        %v267 = vunpack.c.l.b16 %v220
        %v268 = vunpack.c.l.b16 %v221
        %v269 = vunpack.c.l.b16 %v222
        %v270 = vpack.c.b16 %v261, %v260
        %v271 = vpack.c.b16 %v263, %v262
        %v272 = vpack.c.b16 %v265, %v264
        %v273 = vpack.c.b16 %v267, %v266
        %v274 = vpack.c.b16 %v269, %v268
        %vm280 = vcmask 654336
        %v282 = vsel %vm280, %v246, 0
        %v285 = vsel %vm280, %v247, 0
        %v288 = vsel %vm280, %v248, 0
        %v291 = vsel %vm280, %v249, 0
        %293 = vmatprep.subr.bf16.mxu0 0
        %294 = vmatpush1.bf16.msra.mxu0 %v270
        %295 = vmatprep.subr.bf16.mxu0 0
        %296 = vmatpush1.bf16.msra.mxu0 %v271
        %297 = vmatprep.subr.bf16.mxu0 0
        %298 = vmatpush1.bf16.msra.mxu0 %v272
        %299 = vmatprep.subr.bf16.mxu0 0
        %300 = vmatpush1.bf16.msra.mxu0 %v273
        %301 = vmatprep.subr.bf16.mxu0 0
        %302 = vmatpush1.bf16.msra.mxu0 %v274
        %303 = vmatprep.subr.bf16.mxu0 0
        %304 = vmatpush1.bf16.msra.mxu0 0
        %305 = vmatprep.subr.bf16.mxu0 0
        %306 = vmatpush1.bf16.msra.mxu0 0
        %307 = vmatprep.subr.bf16.mxu0 0
        %308 = vmatpush1.bf16.msra.mxu0 0
        %309 = vmatprep.subr.bf16.mxu0 0
        %310 = vmatpush1.bf16.msra.mxu0 0
        %311 = vmatprep.subr.bf16.mxu0 0
        %312 = vmatpush1.bf16.msra.mxu0 0
        %313 = vmatprep.subr.bf16.mxu0 0
        %314 = vmatpush1.bf16.msra.mxu0 0
        %315 = vmatprep.subr.bf16.mxu0 0
        %316 = vmatpush1.bf16.msra.mxu0 0
        %317 = vmatprep.subr.bf16.mxu0 0
        %318 = vmatpush1.bf16.msra.mxu0 0
        %319 = vmatprep.subr.bf16.mxu0 0
        %320 = vmatpush1.bf16.msra.mxu0 0
        %321 = vmatprep.subr.bf16.mxu0 0
        %322 = vmatpush1.bf16.msra.mxu0 0
        %323 = vmatprep.subr.bf16.mxu0 0
        %324 = vmatpush1.bf16.msra.mxu0 0
        %325 = vmatprep.mubr.bf16.mxu0 0
        %326 = vmatmul.mubr.bf16.gmra.mrb[0].mxu0 %v282
        %v327 = vpop.f32.mrb[0].mxu0
        %v328 = vadd.f32 %v228, %v327
        %v329 = vpop.f32.mrb[0].mxu0
        %v330 = vpop.f32.mrb[0].mxu0
        %v331 = vadd.f32 %v228, %v330
        %v332 = vpop.f32.mrb[0].mxu0
        %333 = vmatprep.mubr.bf16.mxu0 0
        %334 = vmatmul.mubr.bf16.gmra.mrb[0].mxu0 %v285
        %v335 = vpop.f32.mrb[0].mxu0
        %v336 = vadd.f32 %v228, %v335
        %v337 = vpop.f32.mrb[0].mxu0
        %v338 = vpop.f32.mrb[0].mxu0
        %v339 = vadd.f32 %v228, %v338
        %v340 = vpop.f32.mrb[0].mxu0
        %341 = vmatprep.mubr.bf16.mxu0 0
        %342 = vmatmul.mubr.bf16.gmra.mrb[0].mxu0 %v288
        %v343 = vpop.f32.mrb[0].mxu0
        %v344 = vadd.f32 %v228, %v343
        %v345 = vpop.f32.mrb[0].mxu0
        %v346 = vpop.f32.mrb[0].mxu0
        %v347 = vadd.f32 %v228, %v346
        %v348 = vpop.f32.mrb[0].mxu0
        %349 = vmatprep.mubr.bf16.mxu0 0
        %350 = vmatmul.mubr.bf16.gmra.mrb[0].mxu0 %v291
        %v351 = vpop.f32.mrb[0].mxu0
        %v352 = vadd.f32 %v228, %v351
        %v353 = vpop.f32.mrb[0].mxu0
        %v354 = vpop.f32.mrb[0].mxu0
        %v355 = vadd.f32 %v228, %v354
        %v356 = vpop.f32.mrb[0].mxu0
        %357 = vdwg.mxu0
        %v358 = vmax.f32 %v328, 0.0
        %v359 = vmax.f32 %v331, 0.0
        %v360 = vmax.f32 %v336, 0.0
        %v361 = vmax.f32 %v339, 0.0
        %v362 = vmax.f32 %v344, 0.0
        %v363 = vmax.f32 %v347, 0.0
        %v364 = vmax.f32 %v352, 0.0
        %v365 = vmax.f32 %v355, 0.0
        %v366 = vpack.c.bf16 %v359, %v358
        %v367 = vpack.c.bf16 %v361, %v360
        %v368 = vpack.c.bf16 %v363, %v362
        %v369 = vpack.c.bf16 %v365, %v364
        %v374 = vunpack.c.l.b16 %v366
        %v375 = vunpack.c.h.b16 %v366
        %v376 = vunpack.c.l.b16 %v367
        %v377 = vunpack.c.h.b16 %v367
        %v378 = vunpack.c.l.b16 %v368
        %v379 = vunpack.c.h.b16 %v368
        %v380 = vunpack.c.l.b16 %v369
        %v381 = vunpack.c.h.b16 %v369
        %v382 = vpack.c.b16 %v374, %v374
        %v383 = vpack.c.b16 %v375, %v375
        %v384 = vpack.c.b16 %v376, %v376
        %v385 = vpack.c.b16 %v377, %v377
        %v386 = vpack.c.b16 %v378, %v378
        %v387 = vpack.c.b16 %v379, %v379
        %v388 = vpack.c.b16 %v380, %v380
        %v389 = vpack.c.b16 %v381, %v381
        %398 = vst [vmem:[%s203] sm:$0xf] %v382
        %399 = vst [vmem:[%s203 + $0x4] sm:$0xf] %v383
        %400 = vst [vmem:[%s203 + $0x8] sm:$0xf] %v384
        %401 = vst [vmem:[%s203 + $0xc] sm:$0xf] %v385
        %402 = vst [vmem:[%s203 + $0x10] sm:$0xf] %v386
        %403 = vst [vmem:[%s203 + $0x14] sm:$0xf] %v387
        %404 = vst [vmem:[%s203 + $0x18] sm:$0xf] %v388
        %405 = vst [vmem:[%s203 + $0x1c] sm:$0xf] %v389
        %s406 = sand.u32 %s97, 1
        %s407 = scalar_lea.sflag [#allocation4], %s406
        %s408 = sand.u32 %s97, 1
        %s409 = smul.addr %s408, 32
        %s410 = scalar_lea.vmem [#allocation7], %s409
        // Predicated region
        $region41: #{tpu_custom_call.1} parent=31 // pred_check
          %p411 = pneg %p107
        $region42: #{tpu_custom_call.1} parent=31 // pred_check_branch
          %413 = sbr.rel (%p411) target = $region44
        $region43: #{tpu_custom_call.1} parent=31 // pred_region
          %s415 = ssub.s32 512, 512
          %416 = vsyncadd %s407, %s415
          %s417 = smul.addr %s21, 8
          %s418 = smul.addr %s417, 64
          %s419 = scalar_lea.hbm %s3, %s418
          %s420 = sshll.u32 %s410, 4
          %s421 = int_to_ptr.vmem [resolvable:$true] %s420
          %426 = dma.vmem_to_hbm [thread:$0]  %s421, 512, %s419, %s407, 64, 64, 4
        $region44: #{tpu_custom_call.1} parent=31 // pred_fallthru
          _
      $region32: #{tpu_custom_call.1} parent=5 // pred_fallthru
        _
      %p427 = scmp.le.s32.totalorder 2, %s16
      // Predicated region
      $region45: #{tpu_custom_call.1} parent=5 // pred_check
        %p428 = pneg %p427
      $region46: #{tpu_custom_call.1} parent=5 // pred_check_branch
        %430 = sbr.rel (%p428) target = $region48
      $region47: #{tpu_custom_call.1} parent=5 // pred_region
        %s431 = ssub.s32 %s16, 2
        // Predicated region
        $region49: #{tpu_custom_call.1} parent=47 // pred_check
          %p432 = pneg %p113
        $region50: #{tpu_custom_call.1} parent=47 // pred_check_branch
          %434 = sbr.rel (%p432) target = $region52
        $region51: #{tpu_custom_call.1} parent=47 // pred_region
          %s435 = sand.u32 %s98, 1
          %s436 = scalar_lea.sflag [#allocation4], %s435
          %s437 = sand.u32 %s98, 1
          %s438 = smul.addr %s437, 32
          %s439 = scalar_lea.vmem [#allocation7], %s438
          %440 = dma.done %s436, 512
        $region52: #{tpu_custom_call.1} parent=47 // pred_fallthru
          _
      $region48: #{tpu_custom_call.1} parent=5 // pred_fallthru
        _
    $region6: #{tpu_custom_call.1} parent=1 // loop_footer
      %s20 = sadd.s32 1, %s16
    $region7: #{tpu_custom_call.1} parent=1 // loop_footer_branch
      %15 = sbr.rel target = $region3
    $region8: #{tpu_custom_call.1} parent=1 // loop_exit
      _
    %441 = vsyncpa [#allocation3], 1
    %s442 = scalar_lea.sflag [#allocation3], 1
    %443 = vsyncpa %s442, 1
    %444 = vsyncpa [#allocation6], 1
    %445 = vsyncpa [#allocation4], 1
    %s446 = scalar_lea.sflag [#allocation4], 1
    %447 = vsyncpa %s446, 1

</llo_original>
